<compile_context>
chip_gen: v5e
topology: v5e:2x2
jax: 0.10.0
libtpu: 0.0.40
codegen_flags: <defaults>
</compile_context>

<pallas_src>
import jax
import jax.numpy as jnp
import numpy as np
from jax.experimental import pallas as pl
from jax.experimental.pallas import tpu as pltpu


def _gcn_kernel(adj_ref, xw_ref, o_ref):
    # adj_ref: (TM, N)    bf16 -- streamed row tile of one batch's adjacency
    # xw_ref:  (N, Dout)  bf16 -- per-batch resident (inputs @ weight)
    # o_ref:   (TM, Dout) f32
    adj = adj_ref[...]                                            # (TM, N) bf16

    # D = 1 / rowsum(adj + I): the identity contributes exactly +1 per row,
    # regardless of adj's own diagonal. (Assumes nonnegative adjacency, as in
    # the reference; a row sum of -1 would divide by zero there too.)
    deg = jnp.sum(adj.astype(jnp.float32), axis=1, keepdims=True) + 1.0
    inv_deg = pl.reciprocal(deg, approx=False)                    # (TM, 1) f32

    # diag(D) @ A @ (XW)  ==  D ⊙ (A @ XW): bf16 MXU matmul, f32 accumulate.
    y = jnp.dot(adj, xw_ref[...], preferred_element_type=jnp.float32)  # (TM, Dout)
    o_ref[...] = jnp.tanh(y * inv_deg).astype(o_ref.dtype)


def _vmem_capacity_bytes():
    """Physical VMEM of the local chip; conservative 64 MiB (v7x) fallback."""
    try:
        cap = int(pltpu.get_tpu_info().vmem_capacity_bytes)
        if cap > 0:
            return cap
    except Exception:
        pass
    return 64 * 1024 * 1024


def _vmem_footprint_bytes(tm, n, dout, adj_bytes, out_bytes=4):
    return (2 * tm * n * adj_bytes        # adj double buffer
            + 2 * n * dout * adj_bytes    # xw double buffer (per-batch resident)
            + 2 * tm * dout * out_bytes)  # output double buffer


def _pick_row_tile(n, dout, adj_bytes, budget_bytes, max_tile=512):
    """Largest multiple-of-16 divisor of n, <= max_tile, fitting the budget."""
    for tm in range(min(n, max_tile) - (min(n, max_tile) % 16), 15, -16):
        if n % tm == 0 and _vmem_footprint_bytes(tm, n, dout, adj_bytes) <= budget_bytes:
            return tm
    # Fallback: full N is always a legal block shape (may be large for odd N).
    return n


def graph_conv_sparse(adj, inputs, weight, *, row_tile=None,
                      compute_dtype=jnp.bfloat16):
    B, N, N2 = adj.shape
    assert N == N2
    Din, Dout = weight.shape
    assert inputs.shape == (B, N, Din)

    # X @ W precomputed with plain XLA (f32), cast to the MXU compute dtype.
    # Its HBM traffic (B*N*Dout) is negligible vs the B*N^2 adjacency stream.
    xw = jnp.matmul(inputs, weight).astype(compute_dtype)    # (B, N, Dout)
    adj_c = adj.astype(compute_dtype)                         # exact for 0/1 adj

    adj_bytes = jnp.dtype(compute_dtype).itemsize
    vmem_cap = _vmem_capacity_bytes()
    budget = (vmem_cap * 3) // 4                              # ~75% of physical

    tm = row_tile if row_tile is not None else _pick_row_tile(N, Dout, adj_bytes, budget)
    assert N % tm == 0

    footprint = _vmem_footprint_bytes(tm, N, Dout, adj_bytes)
    vmem_limit = min(max(int(footprint * 5) // 4, 16 * 1024 * 1024), vmem_cap)

    return pl.pallas_call(
        _gcn_kernel,
        out_shape=jax.ShapeDtypeStruct((B, N, Dout), jnp.float32),
        grid_spec=pltpu.PrefetchScalarGridSpec(
            num_scalar_prefetch=0,
            grid=(B, N // tm),
            in_specs=[
                # adj: streamed (TM, N) row tiles, double-buffered by BlockSpec.
                pl.BlockSpec((pl.Squeezed(), tm, N), lambda b, t: (b, t, 0)),
                # xw: same block across row tiles -> stays resident per batch.
                pl.BlockSpec((pl.Squeezed(), N, Dout), lambda b, t: (b, 0, 0)),
            ],
            out_specs=pl.BlockSpec(
                (pl.Squeezed(), tm, Dout), lambda b, t: (b, t, 0)
            ),
        ),
        compiler_params=pltpu.CompilerParams(
            # No cross-step scratch dependence anymore -> both axes parallel
            # (uses both TensorCores on v7x even when B is 1 or odd).
            dimension_semantics=("parallel", "parallel"),
            vmem_limit_bytes=vmem_limit,
        ),
    )(adj_c, xw)


def glorot_init(key, input_dim, output_dim):
    init_range = np.sqrt(6.0 / (input_dim + output_dim))
    u = jax.random.uniform(key, (input_dim, output_dim), dtype=jnp.float32)
    return u * 2.0 * init_range - init_range


def reference(adj, inputs, weight):
    # Pure-JAX f32 reference mirroring the PyTorch forward exactly.
    B, N, _ = adj.shape
    eye = jnp.broadcast_to(jnp.eye(N, dtype=adj.dtype), (B, N, N))
    D = 1.0 / jnp.sum(adj + eye, axis=2)              # (B, N)
    adj_norm = jnp.einsum('bi,bij->bij', D, adj)
    x = jnp.matmul(inputs, weight)
    x = jnp.matmul(adj_norm, x)
    return jnp.tanh(x)


if __name__ == "__main__":
    key = jax.random.PRNGKey(0)
    k_adj, k_x, k_w = jax.random.split(key, 3)

    # Small but MXU/lane-aligned shapes: Dout multiple of 128 keeps output
    # stores unmasked; N multiple of 16/128 keeps the bf16 adj tiles aligned.
    B, N, Din, Dout = 2, 128, 64, 128

    # Random 0/1 adjacency (nonnegative -> D well-defined; exact in bf16).
    adj = (jax.random.uniform(k_adj, (B, N, N), dtype=jnp.float32) > 0.5).astype(
        jnp.float32
    )
    inputs = jax.random.normal(k_x, (B, N, Din), dtype=jnp.float32)
    weight = glorot_init(k_w, Din, Dout)

    out = graph_conv_sparse(adj, inputs, weight)
    out = jax.block_until_ready(out)

    ref = reference(adj, inputs, weight)
    # bf16 operands on the big matmul -> loosened tolerance vs the f32 reference.
    np.testing.assert_allclose(np.asarray(out), np.asarray(ref), rtol=2e-2, atol=2e-2)

    print("KERNEL_OK")
</pallas_src>

<mosaic_0001>
module attributes {stable_mosaic.version = 11 : i64} {
  func.func @_gcn_kernel(%arg0: i32, %arg1: i32, %arg2: memref<1x128x128xbf16, #tpu.memory_space<vmem>>, %arg3: memref<1x128x128xbf16, #tpu.memory_space<vmem>>, %arg4: memref<1x128x128xf32, #tpu.memory_space<vmem>>) attributes {dimension_semantics = [#tpu.dimension_semantics<parallel>, #tpu.dimension_semantics<parallel>], iteration_bounds = array<i64: 2, 1>, scalar_prefetch = 0 : i64, scratch_operands = 0 : i64, tpu.core_type = #tpu.core_type<tc>, window_params = [{transform_indices = @transform_0, window_bounds = array<i64: 1, 128, 128>}, {transform_indices = @transform_1, window_bounds = array<i64: 1, 128, 128>}, {transform_indices = @transform_2, window_bounds = array<i64: 1, 128, 128>}]} {
    %c0 = arith.constant 0 : index
    %c0_0 = arith.constant 0 : index
    %c0_1 = arith.constant 0 : index
    %0 = vector.load %arg2[%c0, %c0_0, %c0_1] : memref<1x128x128xbf16, #tpu.memory_space<vmem>>, vector<1x128x128xbf16>
    %1 = vector.shape_cast %0 : vector<1x128x128xbf16> to vector<128x128xbf16>
    %2 = arith.extf %1 : vector<128x128xbf16> to vector<128x128xf32>
    %cst = arith.constant dense<0.000000e+00> : vector<128xf32>
    %3 = vector.multi_reduction <add>, %2, %cst [1] : vector<128x128xf32> to vector<128xf32>
    %4 = vector.shape_cast %3 : vector<128xf32> to vector<128x1xf32>
    %cst_2 = arith.constant 1.000000e+00 : f32
    %5 = vector.broadcast %cst_2 : f32 to vector<128x1xf32>
    %6 = arith.addf %4, %5 : vector<128x1xf32>
    %7 = tpu.reciprocal %6 : vector<128x1xf32> -> vector<128x1xf32>
    %c0_3 = arith.constant 0 : index
    %c0_4 = arith.constant 0 : index
    %c0_5 = arith.constant 0 : index
    %8 = vector.load %arg3[%c0_3, %c0_4, %c0_5] : memref<1x128x128xbf16, #tpu.memory_space<vmem>>, vector<1x128x128xbf16>
    %9 = vector.shape_cast %8 : vector<1x128x128xbf16> to vector<128x128xbf16>
    %cst_6 = arith.constant dense<0.000000e+00> : vector<128x128xf32>
    %10 = tpu.matmul %1, %9, %cst_6 {dimension_numbers = #tpu.dot_dimension_numbers<[1], [0], [0], [1], [0, 0, 1, 1], [], []>} : vector<128x128xbf16>, vector<128x128xbf16>, vector<128x128xf32> -> vector<128x128xf32>
    %11 = vector.broadcast %7 : vector<128x1xf32> to vector<128x128xf32>
    %12 = arith.mulf %10, %11 : vector<128x128xf32>
    %13 = math.tanh %12 : vector<128x128xf32>
    %c0_7 = arith.constant 0 : index
    %c0_8 = arith.constant 0 : index
    %c0_9 = arith.constant 0 : index
    %14 = vector.load %arg4[%c0_7, %c0_8, %c0_9] : memref<1x128x128xf32, #tpu.memory_space<vmem>>, vector<1x128x128xf32>
    %15 = vector.shape_cast %14 : vector<1x128x128xf32> to vector<128x128xf32>
    %16 = vector.shape_cast %13 : vector<128x128xf32> to vector<1x128x128xf32>
    tpu.vector_store %arg4[%c0_7, %c0_8, %c0_9], %16 {strides = array<i32>} : memref<1x128x128xf32, #tpu.memory_space<vmem>>, vector<1x128x128xf32>,
    return
  }
  func.func @transform_0(%arg0: i32, %arg1: i32) -> (i32, i32, i32) {
    %c0_i32 = arith.constant 0 : i32
    %c0_i32_0 = arith.constant 0 : i32
    return %arg0, %arg1, %c0_i32 : i32, i32, i32
  }
  func.func @transform_1(%arg0: i32, %arg1: i32) -> (i32, i32, i32) {
    %c0_i32 = arith.constant 0 : i32
    %c0_i32_0 = arith.constant 0 : i32
    %c0_i32_1 = arith.constant 0 : i32
    return %arg0, %c0_i32, %c0_i32_0 : i32, i32, i32
  }
  func.func @transform_2(%arg0: i32, %arg1: i32) -> (i32, i32, i32) {
    %c0_i32 = arith.constant 0 : i32
    %c0_i32_0 = arith.constant 0 : i32
    return %arg0, %arg1, %c0_i32 : i32, i32, i32
  }
}

</mosaic_0001>

<llo_original>
// kernel: tpu_custom_call.1
$region0: #{tpu_custom_call.1}
  #allocation0 [shape = 'u32[]', space=smem, size = 0x4, offset = 0x4, fixed_abs, tag = 'smem constant byte address 0x4 - core index']
  #allocation1 [shape = 'u32[72,128]{1,0:T(1,128)}', space=vmem, size = 0x9000, scoped, tag = 'internal scratch']
  %s0 = inlined_call_operand.hbm [shape: bf16[2,128,128], index: 0, kind: input, shape index: {}]
  %s1 = inlined_call_operand.hbm [shape: bf16[2,128,128], index: 1, kind: input, shape index: {}]
  %s2 = inlined_call_operand.hbm [shape: f32[2,128,128], index: 2, kind: output, shape index: {}]
  %s3 = sld [smem:[#allocation0]]
  $region49: #{tpu_custom_call.1} parent=0
    _
  %s5 = ssub.s32 1, %s3
  %s6 = scalar_select 0, %s5, %s3
  $region1: #{tpu_custom_call.1} parent=0
    #allocation2 [shape = 'u8[65536]{0}', space=vmem, size = 0x10000, scoped, tag = 'input window, operand 0']
    #allocation3 [shape = 's32[2]{0}', space=sflag, size = 0x8, scoped, tag = 'scoped memory for tpu_custom_call.1']
    #allocation4 [shape = 's32[2]{0}', space=sflag, size = 0x8, scoped, tag = 'scoped memory for tpu_custom_call.1']
    #allocation5 [shape = 'u8[65536]{0}', space=vmem, size = 0x10000, scoped, tag = 'input window, operand 1']
    #allocation6 [shape = 's32[2]{0}', space=sflag, size = 0x8, scoped, tag = 'scoped memory for tpu_custom_call.1']
    #allocation7 [shape = 'u8[131072]{0}', space=vmem, size = 0x20000, scoped, tag = 'output window, operand 0']
    %7 = vsyncpa [#allocation3], 0
    %s8 = scalar_lea.sflag [#allocation3], 1
    %9 = vsyncpa %s8, 0
    %10 = vsyncpa [#allocation6], 0
    %s11 = scalar_lea.sflag [#allocation6], 1
    %12 = vsyncpa %s11, 0
    %13 = vsyncpa [#allocation4], 0
    %s14 = scalar_lea.sflag [#allocation4], 1
    %15 = vsyncpa %s14, 0
    loop: start=0, step=1, limit=4
    $region2: #{tpu_custom_call.1} parent=1 // loop_pre_header
      _
    $region3: #{tpu_custom_call.1} parent=1 // loop_header
      %s17 = sphi 0, %s21
      %p18 = scmp.ge.s32.totalorder %s17, 4
      %s24 = sphi 0, %s36
      %s25 = sphi 0, %s32
      %s26 = sphi 0, %s24
      %s27 = sphi 0, %s25
      %s28 = sphi 0, %s26
      %s29 = sphi 0, %s27
      %s41 = sphi 0, %s43
      %s44 = sphi 0, %s41
      %s45 = sphi 0, %s44
      %s61 = sphi 0, %s45
      %s67 = sphi 0, %s69
      %s70 = sphi 0, %s67
      %s71 = sphi 0, %s70
      %s87 = sphi 0, %s71
      %s95 = sphi 0, %s97
      %s98 = sphi 0, %s95
      %s99 = sphi 0, %s98
      %s115 = sphi 0, %s99
    $region4: #{tpu_custom_call.1} parent=1 // loop_header_branch
      %20 = sbr.rel (%p18) target = $region8
    $region5: #{tpu_custom_call.1} parent=1 // loop_body
      %s22 = ssub.s32 %s17, 1
      %s23 = ssub.s32 %s17, 2
      %s30 = sadd.s32 1, %s25
      %p31 = scmp.ge.s32.totalorder %s30, 1
      %s32 = scalar_select %p31, 0, %s30
      %s33 = sadd.s32 1, %s24
      %s34 = scalar_select %p31, %s33, %s24
      %p35 = scmp.ge.s32.totalorder %s34, 2
      %s36 = scalar_select %p35, 0, %s34
      %s37 = ssub.s32 %s24, %s36
      %s38 = ssub.s32 %s25, %s32
      %s39 = sor.u32 %s37, %s38
      %p40 = scmp.eq.s32.totalorder %s39, 0
      %s42 = sadd.s32 %s41, 1
      %s43 = scalar_select %p40, %s41, %s42
      %p46 = pneg %p40
      %p47 = scmp.eq.s32.totalorder %s17, 1
      %p48 = por %p46, %p47
      %p49 = scmp.ne.s32.totalorder %s41, %s44
      %p50 = scmp.eq.s32.totalorder %s17, 0
      %p51 = por %p49, %p50
      %p52 = scmp.ne.s32.totalorder %s41, %s44
      %p53 = scmp.eq.s32.totalorder %s22, 1
      %p54 = por %p52, %p53
      %p55 = scmp.ne.s32.totalorder %s44, %s45
      %p56 = scmp.eq.s32.totalorder %s22, 0
      %p57 = por %p55, %p56
      %p58 = scmp.ne.s32.totalorder %s44, %s45
      %p59 = scmp.eq.s32.totalorder %s23, 1
      %p60 = por %p58, %p59
      %p62 = scmp.ne.s32.totalorder %s45, %s61
      %p63 = scmp.eq.s32.totalorder %s23, 0
      %p64 = por %p62, %p63
      %s65 = ssub.s32 %s24, %s36
      %p66 = scmp.eq.s32.totalorder %s65, 0
      %s68 = sadd.s32 %s67, 1
      %s69 = scalar_select %p66, %s67, %s68
      %p72 = pneg %p66
      %p73 = scmp.eq.s32.totalorder %s17, 1
      %p74 = por %p72, %p73
      %p75 = scmp.ne.s32.totalorder %s67, %s70
      %p76 = scmp.eq.s32.totalorder %s17, 0
      %p77 = por %p75, %p76
      %p78 = scmp.ne.s32.totalorder %s67, %s70
      %p79 = scmp.eq.s32.totalorder %s22, 1
      %p80 = por %p78, %p79
      %p81 = scmp.ne.s32.totalorder %s70, %s71
      %p82 = scmp.eq.s32.totalorder %s22, 0
      %p83 = por %p81, %p82
      %p84 = scmp.ne.s32.totalorder %s70, %s71
      %p85 = scmp.eq.s32.totalorder %s23, 1
      %p86 = por %p84, %p85
      %p88 = scmp.ne.s32.totalorder %s71, %s87
      %p89 = scmp.eq.s32.totalorder %s23, 0
      %p90 = por %p88, %p89
      %s91 = ssub.s32 %s24, %s36
      %s92 = ssub.s32 %s25, %s32
      %s93 = sor.u32 %s91, %s92
      %p94 = scmp.eq.s32.totalorder %s93, 0
      %s96 = sadd.s32 %s95, 1
      %s97 = scalar_select %p94, %s95, %s96
      %p100 = pneg %p94
      %p101 = scmp.eq.s32.totalorder %s17, 1
      %p102 = por %p100, %p101
      %p103 = scmp.ne.s32.totalorder %s95, %s98
      %p104 = scmp.eq.s32.totalorder %s17, 0
      %p105 = por %p103, %p104
      %p106 = scmp.ne.s32.totalorder %s95, %s98
      %p107 = scmp.eq.s32.totalorder %s22, 1
      %p108 = por %p106, %p107
      %p109 = scmp.ne.s32.totalorder %s98, %s99
      %p110 = scmp.eq.s32.totalorder %s22, 0
      %p111 = por %p109, %p110
      %p112 = scmp.ne.s32.totalorder %s98, %s99
      %p113 = scmp.eq.s32.totalorder %s23, 1
      %p114 = por %p112, %p113
      %p116 = scmp.ne.s32.totalorder %s99, %s115
      %p117 = scmp.eq.s32.totalorder %s23, 0
      %p118 = por %p116, %p117
      %p119 = scmp.le.s32.totalorder 1, %s17
      %p120 = scmp.lt.s32.totalorder %s17, 3
      %p121 = pnand %p119, %p120
      %p122 = pneg %p121
      // Predicated region
      $region9: #{tpu_custom_call.1} parent=5 // pred_check
        _
      $region10: #{tpu_custom_call.1} parent=5 // pred_check_branch
        %124 = sbr.rel (%p121) target = $region12
      $region11: #{tpu_custom_call.1} parent=5 // pred_region
        %s125 = ssub.s32 %s17, 1
      $region12: #{tpu_custom_call.1} parent=5 // pred_fallthru
        _
      %p126 = scmp.lt.s32.totalorder %s17, 2
      // Predicated region
      $region13: #{tpu_custom_call.1} parent=5 // pred_check
        %p127 = pneg %p126
      $region14: #{tpu_custom_call.1} parent=5 // pred_check_branch
        %129 = sbr.rel (%p127) target = $region16
      $region15: #{tpu_custom_call.1} parent=5 // pred_region
        // Predicated region
        $region17: #{tpu_custom_call.1} parent=15 // pred_check
          %p130 = pneg %p51
        $region18: #{tpu_custom_call.1} parent=15 // pred_check_branch
          %132 = sbr.rel (%p130) target = $region20
        $region19: #{tpu_custom_call.1} parent=15 // pred_region
          %s133 = sand.u32 %s41, 1
          %s134 = scalar_lea.sflag [#allocation3], %s133
          %s135 = sand.u32 %s41, 1
          %s136 = smul.addr %s135, 64
          %s137 = scalar_lea.vmem [#allocation2], %s136
          %s138 = smul.u32 16, %s25
          %140 = vsyncadd %s134, 0
          %s141 = smul.addr %s24, 16
          %s142 = sadd.s32 %s138, %s141
          %s143 = smul.addr %s142, 4
          %s144 = scalar_lea.hbm %s0, %s143
          %s145 = sshll.u32 %s144, 4
          %s146 = int_to_ptr.hbm [resolvable:$true] %s145
          %s147 = sshll.u32 %s137, 4
          %s148 = int_to_ptr.vmem [resolvable:$true] %s147
          %153 = dma.hbm_to_vmem [thread:$0]  %s146, 1024, %s148, %s134, 64, 64, 4
        $region20: #{tpu_custom_call.1} parent=15 // pred_fallthru
          _
        // Predicated region
        $region21: #{tpu_custom_call.1} parent=15 // pred_check
          %p154 = pneg %p77
        $region22: #{tpu_custom_call.1} parent=15 // pred_check_branch
          %156 = sbr.rel (%p154) target = $region24
        $region23: #{tpu_custom_call.1} parent=15 // pred_region
          %s157 = sand.u32 %s67, 1
          %s158 = scalar_lea.sflag [#allocation6], %s157
          %s159 = sand.u32 %s67, 1
          %s160 = smul.addr %s159, 64
          %s161 = scalar_lea.vmem [#allocation5], %s160
          %163 = vsyncadd %s158, 0
          %s164 = smul.addr %s24, 16
          %s165 = smul.addr %s164, 4
          %s166 = scalar_lea.hbm %s1, %s165
          %s167 = sshll.u32 %s166, 4
          %s168 = int_to_ptr.hbm [resolvable:$true] %s167
          %s169 = sshll.u32 %s161, 4
          %s170 = int_to_ptr.vmem [resolvable:$true] %s169
          %175 = dma.hbm_to_vmem [thread:$0]  %s168, 1024, %s170, %s158, 64, 64, 4
        $region24: #{tpu_custom_call.1} parent=15 // pred_fallthru
          _
      $region16: #{tpu_custom_call.1} parent=5 // pred_fallthru
        _
      %p176 = scmp.le.s32.totalorder 1, %s17
      %p177 = scmp.lt.s32.totalorder %s17, 3
      %p178 = pnand %p176, %p177
      %p179 = pneg %p178
      // Predicated region
      $region25: #{tpu_custom_call.1} parent=5 // pred_check
        _
      $region26: #{tpu_custom_call.1} parent=5 // pred_check_branch
        %181 = sbr.rel (%p178) target = $region28
      $region27: #{tpu_custom_call.1} parent=5 // pred_region
        %s182 = ssub.s32 %s17, 1
        %s183 = sand.u32 %s44, 1
        %s184 = scalar_lea.sflag [#allocation3], %s183
        %s185 = sand.u32 %s44, 1
        %s186 = smul.addr %s185, 64
        %s187 = scalar_lea.vmem [#allocation2], %s186
        // Predicated region
        $region29: #{tpu_custom_call.1} parent=27 // pred_check
          %p188 = pneg %p57
        $region30: #{tpu_custom_call.1} parent=27 // pred_check_branch
          %190 = sbr.rel (%p188) target = $region32
        $region31: #{tpu_custom_call.1} parent=27 // pred_region
          %192 = dma.done %s184, 1024
        $region32: #{tpu_custom_call.1} parent=27 // pred_fallthru
          _
        %s193 = sand.u32 %s70, 1
        %s194 = scalar_lea.sflag [#allocation6], %s193
        %s195 = sand.u32 %s70, 1
        %s196 = smul.addr %s195, 64
        %s197 = scalar_lea.vmem [#allocation5], %s196
        // Predicated region
        $region33: #{tpu_custom_call.1} parent=27 // pred_check
          %p198 = pneg %p83
        $region34: #{tpu_custom_call.1} parent=27 // pred_check_branch
          %200 = sbr.rel (%p198) target = $region36
        $region35: #{tpu_custom_call.1} parent=27 // pred_region
          %202 = dma.done %s194, 1024
        $region36: #{tpu_custom_call.1} parent=27 // pred_fallthru
          _
        %s203 = sand.u32 %s44, 1
        %s204 = scalar_lea.sflag [#allocation3], %s203
        %s205 = sand.u32 %s44, 1
        %s206 = smul.addr %s205, 64
        %s207 = scalar_lea.vmem [#allocation2], %s206
        %p208 = pneg %p57
        %p209 = pneg %p54
        %s210 = sand.u32 %s70, 1
        %s211 = scalar_lea.sflag [#allocation6], %s210
        %s212 = sand.u32 %s70, 1
        %s213 = smul.addr %s212, 64
        %s214 = scalar_lea.vmem [#allocation5], %s213
        %p215 = pneg %p83
        %p216 = pneg %p80
        %p217 = pneg %p111
        %p218 = pneg %p108
        %s219 = sand.u32 %s98, 1
        %s220 = scalar_lea.sflag [#allocation4], %s219
        %s221 = sand.u32 %s98, 1
        %s222 = smul.addr %s221, 128
        %s223 = scalar_lea.vmem [#allocation7], %s222
        %s224 = smul.u32 16, %s27
        %s225 = smul.u32 16, %s27
        %v226 = vld [vmem:[%s187] sm:$0xf]
        %v227 = vld [vmem:[%s187 + $0x4] sm:$0xf]
        %v228 = vld [vmem:[%s187 + $0x8] sm:$0xf]
        %v229 = vld [vmem:[%s187 + $0xc] sm:$0xf]
        %v230 = vld [vmem:[%s187 + $0x10] sm:$0xf]
        %v231 = vld [vmem:[%s187 + $0x14] sm:$0xf]
        %v232 = vld [vmem:[%s187 + $0x18] sm:$0xf]
        %v233 = vld [vmem:[%s187 + $0x1c] sm:$0xf]
        %v234 = vld [vmem:[%s187 + $0x20] sm:$0xf]
        %v235 = vld [vmem:[%s187 + $0x24] sm:$0xf]
        %v236 = vld [vmem:[%s187 + $0x28] sm:$0xf]
        %v237 = vld [vmem:[%s187 + $0x2c] sm:$0xf]
        %v238 = vld [vmem:[%s187 + $0x30] sm:$0xf]
        %v239 = vld [vmem:[%s187 + $0x34] sm:$0xf]
        %v240 = vld [vmem:[%s187 + $0x38] sm:$0xf]
        %v241 = vld [vmem:[%s187 + $0x3c] sm:$0xf]
        %v242 = vunpack.c.l.bf16 %v226
        %v243 = vunpack.c.l.bf16 %v227
        %v244 = vunpack.c.l.bf16 %v228
        %v245 = vunpack.c.l.bf16 %v229
        %v246 = vunpack.c.l.bf16 %v230
        %v247 = vunpack.c.l.bf16 %v231
        %v248 = vunpack.c.l.bf16 %v232
        %v249 = vunpack.c.l.bf16 %v233
        %v250 = vunpack.c.l.bf16 %v234
        %v251 = vunpack.c.l.bf16 %v235
        %v252 = vunpack.c.l.bf16 %v236
        %v253 = vunpack.c.l.bf16 %v237
        %v254 = vunpack.c.l.bf16 %v238
        %v255 = vunpack.c.l.bf16 %v239
        %v256 = vunpack.c.l.bf16 %v240
        %v257 = vunpack.c.l.bf16 %v241
        %258 = vadd.xlane.f32.xlu0 %v242
        %v259 = vpop.xlane.xlu0 %258
        %260 = vadd.xlane.f32.xlu0 %v243
        %v261 = vpop.xlane.xlu0 %260
        %262 = vadd.xlane.f32.xlu0 %v244
        %v263 = vpop.xlane.xlu0 %262
        %264 = vadd.xlane.f32.xlu0 %v245
        %v265 = vpop.xlane.xlu0 %264
        %266 = vadd.xlane.f32.xlu0 %v246
        %v267 = vpop.xlane.xlu0 %266
        %268 = vadd.xlane.f32.xlu0 %v247
        %v269 = vpop.xlane.xlu0 %268
        %270 = vadd.xlane.f32.xlu0 %v248
        %v271 = vpop.xlane.xlu0 %270
        %272 = vadd.xlane.f32.xlu0 %v249
        %v273 = vpop.xlane.xlu0 %272
        %274 = vadd.xlane.f32.xlu0 %v250
        %v275 = vpop.xlane.xlu0 %274
        %276 = vadd.xlane.f32.xlu0 %v251
        %v277 = vpop.xlane.xlu0 %276
        %278 = vadd.xlane.f32.xlu0 %v252
        %v279 = vpop.xlane.xlu0 %278
        %280 = vadd.xlane.f32.xlu0 %v253
        %v281 = vpop.xlane.xlu0 %280
        %282 = vadd.xlane.f32.xlu0 %v254
        %v283 = vpop.xlane.xlu0 %282
        %284 = vadd.xlane.f32.xlu0 %v255
        %v285 = vpop.xlane.xlu0 %284
        %286 = vadd.xlane.f32.xlu0 %v256
        %v287 = vpop.xlane.xlu0 %286
        %288 = vadd.xlane.f32.xlu0 %v257
        %v289 = vpop.xlane.xlu0 %288
        %v290 = vadd.f32 %v259, 1.0
        %v291 = vadd.f32 %v261, 1.0
        %v292 = vadd.f32 %v263, 1.0
        %v293 = vadd.f32 %v265, 1.0
        %v294 = vadd.f32 %v267, 1.0
        %v295 = vadd.f32 %v269, 1.0
        %v296 = vadd.f32 %v271, 1.0
        %v297 = vadd.f32 %v273, 1.0
        %v298 = vadd.f32 %v275, 1.0
        %v299 = vadd.f32 %v277, 1.0
        %v300 = vadd.f32 %v279, 1.0
        %v301 = vadd.f32 %v281, 1.0
        %v302 = vadd.f32 %v283, 1.0
        %v303 = vadd.f32 %v285, 1.0
        %v304 = vadd.f32 %v287, 1.0
        %v305 = vadd.f32 %v289, 1.0
        %v306 = vrcp.pop %v290
        %v307 = vmul.f32 %v290, %v306
        %v308 = vsub.f32 1.0, %v307
        %v309 = vmul.f32 %v306, %v308
        %v310 = vadd.f32 %v306, %v309
        %vm311 = vweird.f32 %v290
        %vm312 = vweird.f32 %v306
        %vm313 = vmor %vm311, %vm312
        %v314 = vsel %vm313, %v306, %v310
        %v315 = vand.u32 2147483647, %v290
        %vm316 = vcmp.eq.f32.partialorder %v315, 8.507059e+37
        %v317 = vand.u32 %v290, 2147483648
        %v318 = vor.u32 1.1754944e-38, %v317
        %v319 = vsel %vm316, %v318, %v314
        %v320 = vrcp.pop %v291
        %v321 = vmul.f32 %v291, %v320
        %v322 = vsub.f32 1.0, %v321
        %v323 = vmul.f32 %v320, %v322
        %v324 = vadd.f32 %v320, %v323
        %vm325 = vweird.f32 %v291
        %vm326 = vweird.f32 %v320
        %vm327 = vmor %vm325, %vm326
        %v328 = vsel %vm327, %v320, %v324
        %v329 = vand.u32 2147483647, %v291
        %vm330 = vcmp.eq.f32.partialorder %v329, 8.507059e+37
        %v331 = vand.u32 %v291, 2147483648
        %v332 = vor.u32 1.1754944e-38, %v331
        %v333 = vsel %vm330, %v332, %v328
        %v334 = vrcp.pop %v292
        %v335 = vmul.f32 %v292, %v334
        %v336 = vsub.f32 1.0, %v335
        %v337 = vmul.f32 %v334, %v336
        %v338 = vadd.f32 %v334, %v337
        %vm339 = vweird.f32 %v292
        %vm340 = vweird.f32 %v334
        %vm341 = vmor %vm339, %vm340
        %v342 = vsel %vm341, %v334, %v338
        %v343 = vand.u32 2147483647, %v292
        %vm344 = vcmp.eq.f32.partialorder %v343, 8.507059e+37
        %v345 = vand.u32 %v292, 2147483648
        %v346 = vor.u32 1.1754944e-38, %v345
        %v347 = vsel %vm344, %v346, %v342
        %v348 = vrcp.pop %v293
        %v349 = vmul.f32 %v293, %v348
        %v350 = vsub.f32 1.0, %v349
        %v351 = vmul.f32 %v348, %v350
        %v352 = vadd.f32 %v348, %v351
        %vm353 = vweird.f32 %v293
        %vm354 = vweird.f32 %v348
        %vm355 = vmor %vm353, %vm354
        %v356 = vsel %vm355, %v348, %v352
        %v357 = vand.u32 2147483647, %v293
        %vm358 = vcmp.eq.f32.partialorder %v357, 8.507059e+37
        %v359 = vand.u32 %v293, 2147483648
        %v360 = vor.u32 1.1754944e-38, %v359
        %v361 = vsel %vm358, %v360, %v356
        %v362 = vrcp.pop %v294
        %v363 = vmul.f32 %v294, %v362
        %v364 = vsub.f32 1.0, %v363
        %v365 = vmul.f32 %v362, %v364
        %v366 = vadd.f32 %v362, %v365
        %vm367 = vweird.f32 %v294
        %vm368 = vweird.f32 %v362
        %vm369 = vmor %vm367, %vm368
        %v370 = vsel %vm369, %v362, %v366
        %v371 = vand.u32 2147483647, %v294
        %vm372 = vcmp.eq.f32.partialorder %v371, 8.507059e+37
        %v373 = vand.u32 %v294, 2147483648
        %v374 = vor.u32 1.1754944e-38, %v373
        %v375 = vsel %vm372, %v374, %v370
        %v376 = vrcp.pop %v295
        %v377 = vmul.f32 %v295, %v376
        %v378 = vsub.f32 1.0, %v377
        %v379 = vmul.f32 %v376, %v378
        %v380 = vadd.f32 %v376, %v379
        %vm381 = vweird.f32 %v295
        %vm382 = vweird.f32 %v376
        %vm383 = vmor %vm381, %vm382
        %v384 = vsel %vm383, %v376, %v380
        %v385 = vand.u32 2147483647, %v295
        %vm386 = vcmp.eq.f32.partialorder %v385, 8.507059e+37
        %v387 = vand.u32 %v295, 2147483648
        %v388 = vor.u32 1.1754944e-38, %v387
        %v389 = vsel %vm386, %v388, %v384
        %v390 = vrcp.pop %v296
        %v391 = vmul.f32 %v296, %v390
        %v392 = vsub.f32 1.0, %v391
        %v393 = vmul.f32 %v390, %v392
        %v394 = vadd.f32 %v390, %v393
        %vm395 = vweird.f32 %v296
        %vm396 = vweird.f32 %v390
        %vm397 = vmor %vm395, %vm396
        %v398 = vsel %vm397, %v390, %v394
        %v399 = vand.u32 2147483647, %v296
        %vm400 = vcmp.eq.f32.partialorder %v399, 8.507059e+37
        %v401 = vand.u32 %v296, 2147483648
        %v402 = vor.u32 1.1754944e-38, %v401
        %v403 = vsel %vm400, %v402, %v398
        %v404 = vrcp.pop %v297
        %v405 = vmul.f32 %v297, %v404
        %v406 = vsub.f32 1.0, %v405
        %v407 = vmul.f32 %v404, %v406
        %v408 = vadd.f32 %v404, %v407
        %vm409 = vweird.f32 %v297
        %vm410 = vweird.f32 %v404
        %vm411 = vmor %vm409, %vm410
        %v412 = vsel %vm411, %v404, %v408
        %v413 = vand.u32 2147483647, %v297
        %vm414 = vcmp.eq.f32.partialorder %v413, 8.507059e+37
        %v415 = vand.u32 %v297, 2147483648
        %v416 = vor.u32 1.1754944e-38, %v415
        %v417 = vsel %vm414, %v416, %v412
        %v418 = vrcp.pop %v298
        %v419 = vmul.f32 %v298, %v418
        %v420 = vsub.f32 1.0, %v419
        %v421 = vmul.f32 %v418, %v420
        %v422 = vadd.f32 %v418, %v421
        %vm423 = vweird.f32 %v298
        %vm424 = vweird.f32 %v418
        %vm425 = vmor %vm423, %vm424
        %v426 = vsel %vm425, %v418, %v422
        %v427 = vand.u32 2147483647, %v298
        %vm428 = vcmp.eq.f32.partialorder %v427, 8.507059e+37
        %v429 = vand.u32 %v298, 2147483648
        %v430 = vor.u32 1.1754944e-38, %v429
        %v431 = vsel %vm428, %v430, %v426
        %v432 = vrcp.pop %v299
        %v433 = vmul.f32 %v299, %v432
        %v434 = vsub.f32 1.0, %v433
        %v435 = vmul.f32 %v432, %v434
        %v436 = vadd.f32 %v432, %v435
        %vm437 = vweird.f32 %v299
        %vm438 = vweird.f32 %v432
        %vm439 = vmor %vm437, %vm438
        %v440 = vsel %vm439, %v432, %v436
        %v441 = vand.u32 2147483647, %v299
        %vm442 = vcmp.eq.f32.partialorder %v441, 8.507059e+37
        %v443 = vand.u32 %v299, 2147483648
        %v444 = vor.u32 1.1754944e-38, %v443
        %v445 = vsel %vm442, %v444, %v440
        %v446 = vrcp.pop %v300
        %v447 = vmul.f32 %v300, %v446
        %v448 = vsub.f32 1.0, %v447
        %v449 = vmul.f32 %v446, %v448
        %v450 = vadd.f32 %v446, %v449
        %vm451 = vweird.f32 %v300
        %vm452 = vweird.f32 %v446
        %vm453 = vmor %vm451, %vm452
        %v454 = vsel %vm453, %v446, %v450
        %v455 = vand.u32 2147483647, %v300
        %vm456 = vcmp.eq.f32.partialorder %v455, 8.507059e+37
        %v457 = vand.u32 %v300, 2147483648
        %v458 = vor.u32 1.1754944e-38, %v457
        %v459 = vsel %vm456, %v458, %v454
        %v460 = vrcp.pop %v301
        %v461 = vmul.f32 %v301, %v460
        %v462 = vsub.f32 1.0, %v461
        %v463 = vmul.f32 %v460, %v462
        %v464 = vadd.f32 %v460, %v463
        %vm465 = vweird.f32 %v301
        %vm466 = vweird.f32 %v460
        %vm467 = vmor %vm465, %vm466
        %v468 = vsel %vm467, %v460, %v464
        %v469 = vand.u32 2147483647, %v301
        %vm470 = vcmp.eq.f32.partialorder %v469, 8.507059e+37
        %v471 = vand.u32 %v301, 2147483648
        %v472 = vor.u32 1.1754944e-38, %v471
        %v473 = vsel %vm470, %v472, %v468
        %v474 = vrcp.pop %v302
        %v475 = vmul.f32 %v302, %v474
        %v476 = vsub.f32 1.0, %v475
        %v477 = vmul.f32 %v474, %v476
        %v478 = vadd.f32 %v474, %v477
        %vm479 = vweird.f32 %v302
        %vm480 = vweird.f32 %v474
        %vm481 = vmor %vm479, %vm480
        %v482 = vsel %vm481, %v474, %v478
        %v483 = vand.u32 2147483647, %v302
        %vm484 = vcmp.eq.f32.partialorder %v483, 8.507059e+37
        %v485 = vand.u32 %v302, 2147483648
        %v486 = vor.u32 1.1754944e-38, %v485
        %v487 = vsel %vm484, %v486, %v482
        %v488 = vrcp.pop %v303
        %v489 = vmul.f32 %v303, %v488
        %v490 = vsub.f32 1.0, %v489
        %v491 = vmul.f32 %v488, %v490
        %v492 = vadd.f32 %v488, %v491
        %vm493 = vweird.f32 %v303
        %vm494 = vweird.f32 %v488
        %vm495 = vmor %vm493, %vm494
        %v496 = vsel %vm495, %v488, %v492
        %v497 = vand.u32 2147483647, %v303
        %vm498 = vcmp.eq.f32.partialorder %v497, 8.507059e+37
        %v499 = vand.u32 %v303, 2147483648
        %v500 = vor.u32 1.1754944e-38, %v499
        %v501 = vsel %vm498, %v500, %v496
        %v502 = vrcp.pop %v304
        %v503 = vmul.f32 %v304, %v502
        %v504 = vsub.f32 1.0, %v503
        %v505 = vmul.f32 %v502, %v504
        %v506 = vadd.f32 %v502, %v505
        %vm507 = vweird.f32 %v304
        %vm508 = vweird.f32 %v502
        %vm509 = vmor %vm507, %vm508
        %v510 = vsel %vm509, %v502, %v506
        %v511 = vand.u32 2147483647, %v304
        %vm512 = vcmp.eq.f32.partialorder %v511, 8.507059e+37
        %v513 = vand.u32 %v304, 2147483648
        %v514 = vor.u32 1.1754944e-38, %v513
        %v515 = vsel %vm512, %v514, %v510
        %v516 = vrcp.pop %v305
        %v517 = vmul.f32 %v305, %v516
        %v518 = vsub.f32 1.0, %v517
        %v519 = vmul.f32 %v516, %v518
        %v520 = vadd.f32 %v516, %v519
        %vm521 = vweird.f32 %v305
        %vm522 = vweird.f32 %v516
        %vm523 = vmor %vm521, %vm522
        %v524 = vsel %vm523, %v516, %v520
        %v525 = vand.u32 2147483647, %v305
        %vm526 = vcmp.eq.f32.partialorder %v525, 8.507059e+37
        %v527 = vand.u32 %v305, 2147483648
        %v528 = vor.u32 1.1754944e-38, %v527
        %v529 = vsel %vm526, %v528, %v524
        %v530 = vld [vmem:[%s197] sm:$0xf]
        %v531 = vld [vmem:[%s197 + $0x4] sm:$0xf]
        %v532 = vld [vmem:[%s197 + $0x8] sm:$0xf]
        %v533 = vld [vmem:[%s197 + $0xc] sm:$0xf]
        %v534 = vld [vmem:[%s197 + $0x10] sm:$0xf]
        %v535 = vld [vmem:[%s197 + $0x14] sm:$0xf]
        %v536 = vld [vmem:[%s197 + $0x18] sm:$0xf]
        %v537 = vld [vmem:[%s197 + $0x1c] sm:$0xf]
        %v538 = vld [vmem:[%s197 + $0x20] sm:$0xf]
        %v539 = vld [vmem:[%s197 + $0x24] sm:$0xf]
        %v540 = vld [vmem:[%s197 + $0x28] sm:$0xf]
        %v541 = vld [vmem:[%s197 + $0x2c] sm:$0xf]
        %v542 = vld [vmem:[%s197 + $0x30] sm:$0xf]
        %v543 = vld [vmem:[%s197 + $0x34] sm:$0xf]
        %v544 = vld [vmem:[%s197 + $0x38] sm:$0xf]
        %v545 = vld [vmem:[%s197 + $0x3c] sm:$0xf]
        %v562 = vunpack.c.l.b16 %v226
        %v563 = vunpack.c.l.b16 %v227
        %v564 = vunpack.c.l.b16 %v228
        %v565 = vunpack.c.l.b16 %v229
        %v566 = vunpack.c.l.b16 %v230
        %v567 = vunpack.c.l.b16 %v231
        %v568 = vunpack.c.l.b16 %v232
        %v569 = vunpack.c.l.b16 %v233
        %v570 = vunpack.c.l.b16 %v234
        %v571 = vunpack.c.l.b16 %v235
        %v572 = vunpack.c.l.b16 %v236
        %v573 = vunpack.c.l.b16 %v237
        %v574 = vunpack.c.l.b16 %v238
        %v575 = vunpack.c.l.b16 %v239
        %v576 = vunpack.c.l.b16 %v240
        %v577 = vunpack.c.l.b16 %v241
        %v578 = vpack.c.b16 %v563, %v562
        %v579 = vpack.c.b16 %v565, %v564
        %v580 = vpack.c.b16 %v567, %v566
        %v581 = vpack.c.b16 %v569, %v568
        %v582 = vpack.c.b16 %v571, %v570
        %v583 = vpack.c.b16 %v573, %v572
        %v584 = vpack.c.b16 %v575, %v574
        %v585 = vpack.c.b16 %v577, %v576
        %v610 = vunpack.c.l.b16 %v530
        %v611 = vunpack.c.l.b16 %v531
        %v612 = vunpack.c.l.b16 %v532
        %v613 = vunpack.c.l.b16 %v533
        %v614 = vunpack.c.l.b16 %v534
        %v615 = vunpack.c.l.b16 %v535
        %v616 = vunpack.c.l.b16 %v536
        %v617 = vunpack.c.l.b16 %v537
        %v618 = vunpack.c.l.b16 %v538
        %v619 = vunpack.c.l.b16 %v539
        %v620 = vunpack.c.l.b16 %v540
        %v621 = vunpack.c.l.b16 %v541
        %v622 = vunpack.c.l.b16 %v542
        %v623 = vunpack.c.l.b16 %v543
        %v624 = vunpack.c.l.b16 %v544
        %v625 = vunpack.c.l.b16 %v545
        %v626 = vpack.c.b16 %v611, %v610
        %v627 = vpack.c.b16 %v613, %v612
        %v628 = vpack.c.b16 %v615, %v614
        %v629 = vpack.c.b16 %v617, %v616
        %v630 = vpack.c.b16 %v619, %v618
        %v631 = vpack.c.b16 %v621, %v620
        %v632 = vpack.c.b16 %v623, %v622
        %v633 = vpack.c.b16 %v625, %v624
        %642 = vmatpush.bf16.msra.mxu0 %v633
        %643 = vmatpush.bf16.msra.mxu0 %v632
        %644 = vmatpush.bf16.msra.mxu0 %v631
        %645 = vmatpush.bf16.msra.mxu0 %v630
        %646 = vmatpush.bf16.msra.mxu0 %v629
        %647 = vmatpush.bf16.msra.mxu0 %v628
        %648 = vmatpush.bf16.msra.mxu0 %v627
        %649 = vmatpush.bf16.msra.mxu0 %v626
        %650 = vmatmul.bf16.gmra.mxu0 %v578
        %v651 = vpop.f32.mrf.mxu0
        %v652 = vadd.f32 0.0, %v651
        %v653 = vpop.f32.mrf.mxu0
        %v654 = vadd.f32 0.0, %v653
        %655 = vmatmul.bf16.gmra.mxu0 %v579
        %v656 = vpop.f32.mrf.mxu0
        %v657 = vadd.f32 0.0, %v656
        %v658 = vpop.f32.mrf.mxu0
        %v659 = vadd.f32 0.0, %v658
        %660 = vmatmul.bf16.gmra.mxu0 %v580
        %v661 = vpop.f32.mrf.mxu0
        %v662 = vadd.f32 0.0, %v661
        %v663 = vpop.f32.mrf.mxu0
        %v664 = vadd.f32 0.0, %v663
        %665 = vmatmul.bf16.gmra.mxu0 %v581
        %v666 = vpop.f32.mrf.mxu0
        %v667 = vadd.f32 0.0, %v666
        %v668 = vpop.f32.mrf.mxu0
        %v669 = vadd.f32 0.0, %v668
        %670 = vmatmul.bf16.gmra.mxu0 %v582
        %v671 = vpop.f32.mrf.mxu0
        %v672 = vadd.f32 0.0, %v671
        %v673 = vpop.f32.mrf.mxu0
        %v674 = vadd.f32 0.0, %v673
        %675 = vmatmul.bf16.gmra.mxu0 %v583
        %v676 = vpop.f32.mrf.mxu0
        %v677 = vadd.f32 0.0, %v676
        %v678 = vpop.f32.mrf.mxu0
        %v679 = vadd.f32 0.0, %v678
        %680 = vmatmul.bf16.gmra.mxu0 %v584
        %v681 = vpop.f32.mrf.mxu0
        %v682 = vadd.f32 0.0, %v681
        %v683 = vpop.f32.mrf.mxu0
        %v684 = vadd.f32 0.0, %v683
        %685 = vmatmul.bf16.gmra.mxu0 %v585
        %v686 = vpop.f32.mrf.mxu0
        %v687 = vadd.f32 0.0, %v686
        %v688 = vpop.f32.mrf.mxu0
        %v689 = vadd.f32 0.0, %v688
        %690 = vdwg.mxu0
        %v691 = vmul.f32 %v652, %v319
        %v692 = vmul.f32 %v654, %v333
        %v693 = vmul.f32 %v657, %v347
        %v694 = vmul.f32 %v659, %v361
        %v695 = vmul.f32 %v662, %v375
        %v696 = vmul.f32 %v664, %v389
        %v697 = vmul.f32 %v667, %v403
        %v698 = vmul.f32 %v669, %v417
        %v699 = vmul.f32 %v672, %v431
        %v700 = vmul.f32 %v674, %v445
        %v701 = vmul.f32 %v677, %v459
        %v702 = vmul.f32 %v679, %v473
        %v703 = vmul.f32 %v682, %v487
        %v704 = vmul.f32 %v684, %v501
        %v705 = vmul.f32 %v687, %v515
        %v706 = vmul.f32 %v689, %v529
        %v707 = vtanh.pop %v691
        %v708 = vtanh.pop %v692
        %v709 = vtanh.pop %v693
        %v710 = vtanh.pop %v694
        %v711 = vtanh.pop %v695
        %v712 = vtanh.pop %v696
        %v713 = vtanh.pop %v697
        %v714 = vtanh.pop %v698
        %v715 = vtanh.pop %v699
        %v716 = vtanh.pop %v700
        %v717 = vtanh.pop %v701
        %v718 = vtanh.pop %v702
        %v719 = vtanh.pop %v703
        %v720 = vtanh.pop %v704
        %v721 = vtanh.pop %v705
        %v722 = vtanh.pop %v706
        %723 = vst [vmem:[%s223] sm:$0xff] %v707
        %724 = vst [vmem:[%s223 + $0x8] sm:$0xff] %v708
        %725 = vst [vmem:[%s223 + $0x10] sm:$0xff] %v709
        %726 = vst [vmem:[%s223 + $0x18] sm:$0xff] %v710
        %727 = vst [vmem:[%s223 + $0x20] sm:$0xff] %v711
        %728 = vst [vmem:[%s223 + $0x28] sm:$0xff] %v712
        %729 = vst [vmem:[%s223 + $0x30] sm:$0xff] %v713
        %730 = vst [vmem:[%s223 + $0x38] sm:$0xff] %v714
        %731 = vst [vmem:[%s223 + $0x40] sm:$0xff] %v715
        %732 = vst [vmem:[%s223 + $0x48] sm:$0xff] %v716
        %733 = vst [vmem:[%s223 + $0x50] sm:$0xff] %v717
        %734 = vst [vmem:[%s223 + $0x58] sm:$0xff] %v718
        %735 = vst [vmem:[%s223 + $0x60] sm:$0xff] %v719
        %736 = vst [vmem:[%s223 + $0x68] sm:$0xff] %v720
        %737 = vst [vmem:[%s223 + $0x70] sm:$0xff] %v721
        %738 = vst [vmem:[%s223 + $0x78] sm:$0xff] %v722
        %s739 = sand.u32 %s98, 1
        %s740 = scalar_lea.sflag [#allocation4], %s739
        %s741 = sand.u32 %s98, 1
        %s742 = smul.addr %s741, 128
        %s743 = scalar_lea.vmem [#allocation7], %s742
        // Predicated region
        $region37: #{tpu_custom_call.1} parent=27 // pred_check
          %p744 = pneg %p108
        $region38: #{tpu_custom_call.1} parent=27 // pred_check_branch
          %746 = sbr.rel (%p744) target = $region40
        $region39: #{tpu_custom_call.1} parent=27 // pred_region
          %s747 = smul.u32 16, %s27
          %749 = vsyncadd %s740, 0
          %s750 = smul.addr %s26, 16
          %s751 = sadd.s32 %s747, %s750
          %s752 = smul.addr %s751, 8
          %s753 = scalar_lea.hbm %s2, %s752
          %s754 = sshll.u32 %s743, 4
          %s755 = int_to_ptr.vmem [resolvable:$true] %s754
          %s756 = sshll.u32 %s753, 4
          %s757 = int_to_ptr.hbm [resolvable:$true] %s756
          %762 = dma.vmem_to_hbm [thread:$0]  %s755, 2048, %s757, %s740, 128, 128, 8
        $region40: #{tpu_custom_call.1} parent=27 // pred_fallthru
          _
      $region28: #{tpu_custom_call.1} parent=5 // pred_fallthru
        _
      %p763 = scmp.le.s32.totalorder 2, %s17
      // Predicated region
      $region41: #{tpu_custom_call.1} parent=5 // pred_check
        %p764 = pneg %p763
      $region42: #{tpu_custom_call.1} parent=5 // pred_check_branch
        %766 = sbr.rel (%p764) target = $region44
      $region43: #{tpu_custom_call.1} parent=5 // pred_region
        %s767 = ssub.s32 %s17, 2
        // Predicated region
        $region45: #{tpu_custom_call.1} parent=43 // pred_check
          %p768 = pneg %p114
        $region46: #{tpu_custom_call.1} parent=43 // pred_check_branch
          %770 = sbr.rel (%p768) target = $region48
        $region47: #{tpu_custom_call.1} parent=43 // pred_region
          %s771 = sand.u32 %s99, 1
          %s772 = scalar_lea.sflag [#allocation4], %s771
          %s773 = sand.u32 %s99, 1
          %s774 = smul.addr %s773, 128
          %s775 = scalar_lea.vmem [#allocation7], %s774
          %777 = dma.done %s772, 2048
        $region48: #{tpu_custom_call.1} parent=43 // pred_fallthru
          _
      $region44: #{tpu_custom_call.1} parent=5 // pred_fallthru
        _
    $region6: #{tpu_custom_call.1} parent=1 // loop_footer
      %s21 = sadd.s32 1, %s17
    $region7: #{tpu_custom_call.1} parent=1 // loop_footer_branch
      %16 = sbr.rel target = $region3
    $region8: #{tpu_custom_call.1} parent=1 // loop_exit
      _
    %778 = vsyncpa [#allocation3], 1
    %s779 = scalar_lea.sflag [#allocation3], 1
    %780 = vsyncpa %s779, 1
    %781 = vsyncpa [#allocation6], 1
    %s782 = scalar_lea.sflag [#allocation6], 1
    %783 = vsyncpa %s782, 1
    %784 = vsyncpa [#allocation4], 1
    %s785 = scalar_lea.sflag [#allocation4], 1
    %786 = vsyncpa %s785, 1

</llo_original>
